<compile_context>
chip_gen: v5e
topology: v5e:2x2
jax: 0.10.0
libtpu: 0.0.40
codegen_flags: <defaults>
</compile_context>

<pallas_src>
import functools

import jax
import jax.numpy as jnp
from jax.experimental import pallas as pl
from jax.experimental.pallas import tpu as pltpu

DROP_P = 0.5  # F.dropout default p; the PyTorch forward uses training=True.


def _round_up(n, m):
    return ((n + m - 1) // m) * m


def _fc_kernel(x_ref, m1_ref, m2_ref,
               w1_ref, b1_ref, w2_ref, b2_ref, w3_ref, b3_ref,
               out_ref):
    # x_ref: (TB, in_p) bf16, masks: (TB, hid_p) bf16 in {0, 1/(1-p)},
    # weights: bf16 (in, out) pre-transposed, biases: f32 (1, out).
    x = x_ref[...]

    # linear1 -> dropout -> relu
    h1 = jnp.dot(x, w1_ref[...], preferred_element_type=jnp.float32)
    h1 = h1 + b1_ref[...]
    h1 = jnp.maximum(h1 * m1_ref[...].astype(jnp.float32), 0.0)

    # linear2 -> dropout -> relu
    h2 = jnp.dot(h1.astype(jnp.bfloat16), w2_ref[...],
                 preferred_element_type=jnp.float32)
    h2 = h2 + b2_ref[...]
    h2 = jnp.maximum(h2 * m2_ref[...].astype(jnp.float32), 0.0)

    # linear3
    out = jnp.dot(h2.astype(jnp.bfloat16), w3_ref[...],
                  preferred_element_type=jnp.float32)
    out = out + b3_ref[...]
    out_ref[...] = out.astype(out_ref.dtype)


def init_fc_params(key, input_size, hidden_size, output_size,
                   weight_m=0.0, weight_v=0.02):
    # TODO(synk): `config.weight_m` / `config.weight_v` are not defined in the
    # reference; using mean=0.0, std=0.02 deterministically here.
    ks = jax.random.split(key, 6)

    def linear(kw, kb, fan_in, fan_out):
        w = weight_m + weight_v * jax.random.normal(
            kw, (fan_out, fan_in), jnp.float32)      # torch layout (out, in)
        bound = 1.0 / jnp.sqrt(jnp.float32(fan_in))
        b = jax.random.uniform(kb, (fan_out,), jnp.float32, -bound, bound)
        return w, b

    w1, b1 = linear(ks[0], ks[1], input_size, hidden_size)
    w2, b2 = linear(ks[2], ks[3], hidden_size, hidden_size)
    w3, b3 = linear(ks[4], ks[5], hidden_size, output_size)
    return {"w1": w1, "b1": b1, "w2": w2, "b2": b2, "w3": w3, "b3": b3}


@functools.partial(jax.jit, static_argnames=("tb",))
def fc_forward(x, params, dropout_key, tb=512):
    hidden_size, input_size = params["w1"].shape
    output_size = params["w3"].shape[0]

    xf = x.reshape(-1, input_size)            # cnn_output.view(-1, input_size)
    B = xf.shape[0]

    # ---- lane/sublane-dense padded shapes ----------------------------------
    in_p = _round_up(input_size, 128)
    hid_p = _round_up(hidden_size, 128)
    out_p = _round_up(output_size, 128)
    TB = min(tb, _round_up(B, 128))            # batch tile, multiple of 128
    B_pad = _round_up(B, TB)
    n_tiles = B_pad // TB

    # ---- pad / cast operands ------------------------------------------------
    x_p = jnp.pad(xf, ((0, B_pad - B), (0, in_p - input_size))
                  ).astype(jnp.bfloat16)

    def pad_wt(w, r, c):                       # (out,in) -> padded (in, out) bf16
        wt = w.T
        return jnp.pad(wt, ((0, r - wt.shape[0]), (0, c - wt.shape[1]))
                       ).astype(jnp.bfloat16)

    w1t = pad_wt(params["w1"], in_p, hid_p)
    w2t = pad_wt(params["w2"], hid_p, hid_p)
    w3t = pad_wt(params["w3"], hid_p, out_p)

    def pad_b(b, c):
        return jnp.pad(b, (0, c - b.shape[0])).reshape(1, c).astype(jnp.float32)

    b1 = pad_b(params["b1"], hid_p)
    b2 = pad_b(params["b2"], hid_p)
    b3 = pad_b(params["b3"], out_p)

    # Dropout keep-masks scaled by 1/(1-p): values in {0.0, 2.0} (exact in bf16).
    k1, k2 = jax.random.split(dropout_key)
    scale = 1.0 / (1.0 - DROP_P)
    m1 = jnp.where(jax.random.bernoulli(k1, 1.0 - DROP_P, (B_pad, hid_p)),
                   scale, 0.0).astype(jnp.bfloat16)
    m2 = jnp.where(jax.random.bernoulli(k2, 1.0 - DROP_P, (B_pad, hid_p)),
                   scale, 0.0).astype(jnp.bfloat16)

    # ---- BlockSpecs: batch-tiled activations, resident weights --------------
    x_spec = pl.BlockSpec((TB, in_p), lambda i: (i, 0))
    m_spec = pl.BlockSpec((TB, hid_p), lambda i: (i, 0))
    out_spec = pl.BlockSpec((TB, out_p), lambda i: (i, 0))

    def const_spec(shape):
        return pl.BlockSpec(shape, lambda i: (0, 0))

    # VMEM budget: double-buffered activation tiles + resident weights/biases.
    vmem_bytes = int(
        2 * (TB * in_p * 2 + 2 * TB * hid_p * 2 + TB * out_p * 4)
        + (in_p * hid_p + hid_p * hid_p + hid_p * out_p) * 2
        + (2 * hid_p + out_p) * 4
        + (4 << 20)                                   # headroom
    )

    out_padded = pl.pallas_call(
        _fc_kernel,
        out_shape=jax.ShapeDtypeStruct((B_pad, out_p), jnp.float32),
        grid=(n_tiles,),
        in_specs=[
            x_spec, m_spec, m_spec,
            const_spec((in_p, hid_p)), const_spec((1, hid_p)),
            const_spec((hid_p, hid_p)), const_spec((1, hid_p)),
            const_spec((hid_p, out_p)), const_spec((1, out_p)),
        ],
        out_specs=out_spec,
        compiler_params=pltpu.CompilerParams(
            dimension_semantics=("parallel",),
            vmem_limit_bytes=vmem_bytes,
        ),
    )(x_p, m1, m2, w1t, b1, w2t, b2, w3t, b3)

    return out_padded[:B, :output_size]


if __name__ == "__main__":
    input_size, hidden_size, output_size = 64, 32, 16

    key = jax.random.PRNGKey(0)
    k_param, k_x, k_drop = jax.random.split(key, 3)

    params = init_fc_params(k_param, input_size, hidden_size, output_size)

    # "cnn_output": NCHW tensor whose trailing dims flatten to input_size.
    x = jax.random.normal(k_x, (2, 4, 4, 4), jnp.float32)   # 4*4*4 == 64

    out = fc_forward(x, params, k_drop)
    out = jax.block_until_ready(out)

    assert out.shape == (2, output_size)
    assert bool(jnp.all(jnp.isfinite(out)))
    print("KERNEL_OK")
</pallas_src>

<mosaic_0001>
module attributes {stable_mosaic.version = 11 : i64} {
  func.func @_fc_kernel(%arg0: i32, %arg1: memref<128x128xbf16, #tpu.memory_space<vmem>>, %arg2: memref<128x128xbf16, #tpu.memory_space<vmem>>, %arg3: memref<128x128xbf16, #tpu.memory_space<vmem>>, %arg4: memref<128x128xbf16, #tpu.memory_space<vmem>>, %arg5: memref<1x128xf32, #tpu.memory_space<vmem>>, %arg6: memref<128x128xbf16, #tpu.memory_space<vmem>>, %arg7: memref<1x128xf32, #tpu.memory_space<vmem>>, %arg8: memref<128x128xbf16, #tpu.memory_space<vmem>>, %arg9: memref<1x128xf32, #tpu.memory_space<vmem>>, %arg10: memref<128x128xf32, #tpu.memory_space<vmem>>) attributes {dimension_semantics = [#tpu.dimension_semantics<parallel>], iteration_bounds = array<i64: 1>, scalar_prefetch = 0 : i64, scratch_operands = 0 : i64, tpu.core_type = #tpu.core_type<tc>, window_params = [{transform_indices = @transform_0, window_bounds = array<i64: 128, 128>}, {transform_indices = @transform_1, window_bounds = array<i64: 128, 128>}, {transform_indices = @transform_2, window_bounds = array<i64: 128, 128>}, {pipeline_mode = #tpu.pipeline_mode<synchronous>, transform_indices = @transform_3, window_bounds = array<i64: 128, 128>}, {pipeline_mode = #tpu.pipeline_mode<synchronous>, transform_indices = @transform_4, window_bounds = array<i64: 1, 128>}, {pipeline_mode = #tpu.pipeline_mode<synchronous>, transform_indices = @transform_5, window_bounds = array<i64: 128, 128>}, {pipeline_mode = #tpu.pipeline_mode<synchronous>, transform_indices = @transform_6, window_bounds = array<i64: 1, 128>}, {pipeline_mode = #tpu.pipeline_mode<synchronous>, transform_indices = @transform_7, window_bounds = array<i64: 128, 128>}, {pipeline_mode = #tpu.pipeline_mode<synchronous>, transform_indices = @transform_8, window_bounds = array<i64: 1, 128>}, {transform_indices = @transform_9, window_bounds = array<i64: 128, 128>}]} {
    %c0 = arith.constant 0 : index
    %c0_0 = arith.constant 0 : index
    %0 = vector.load %arg1[%c0, %c0_0] : memref<128x128xbf16, #tpu.memory_space<vmem>>, vector<128x128xbf16>
    %c0_1 = arith.constant 0 : index
    %c0_2 = arith.constant 0 : index
    %1 = vector.load %arg4[%c0_1, %c0_2] : memref<128x128xbf16, #tpu.memory_space<vmem>>, vector<128x128xbf16>
    %cst = arith.constant dense<0.000000e+00> : vector<128x128xf32>
    %2 = tpu.matmul %0, %1, %cst {dimension_numbers = #tpu.dot_dimension_numbers<[1], [0], [0], [1], [0, 0, 1, 1], [], []>} : vector<128x128xbf16>, vector<128x128xbf16>, vector<128x128xf32> -> vector<128x128xf32>
    %c0_3 = arith.constant 0 : index
    %c0_4 = arith.constant 0 : index
    %3 = vector.load %arg5[%c0_3, %c0_4] : memref<1x128xf32, #tpu.memory_space<vmem>>, vector<1x128xf32>
    %4 = vector.broadcast %3 : vector<1x128xf32> to vector<128x128xf32>
    %5 = arith.addf %2, %4 : vector<128x128xf32>
    %c0_5 = arith.constant 0 : index
    %c0_6 = arith.constant 0 : index
    %6 = vector.load %arg2[%c0_5, %c0_6] : memref<128x128xbf16, #tpu.memory_space<vmem>>, vector<128x128xbf16>
    %7 = arith.extf %6 : vector<128x128xbf16> to vector<128x128xf32>
    %8 = arith.mulf %5, %7 : vector<128x128xf32>
    %cst_7 = arith.constant 0.000000e+00 : f32
    %9 = vector.broadcast %cst_7 : f32 to vector<128x128xf32>
    %10 = arith.maximumf %8, %9 : vector<128x128xf32>
    %11 = arith.truncf %10 : vector<128x128xf32> to vector<128x128xbf16>
    %c0_8 = arith.constant 0 : index
    %c0_9 = arith.constant 0 : index
    %12 = vector.load %arg6[%c0_8, %c0_9] : memref<128x128xbf16, #tpu.memory_space<vmem>>, vector<128x128xbf16>
    %cst_10 = arith.constant dense<0.000000e+00> : vector<128x128xf32>
    %13 = tpu.matmul %11, %12, %cst_10 {dimension_numbers = #tpu.dot_dimension_numbers<[1], [0], [0], [1], [0, 0, 1, 1], [], []>} : vector<128x128xbf16>, vector<128x128xbf16>, vector<128x128xf32> -> vector<128x128xf32>
    %c0_11 = arith.constant 0 : index
    %c0_12 = arith.constant 0 : index
    %14 = vector.load %arg7[%c0_11, %c0_12] : memref<1x128xf32, #tpu.memory_space<vmem>>, vector<1x128xf32>
    %15 = vector.broadcast %14 : vector<1x128xf32> to vector<128x128xf32>
    %16 = arith.addf %13, %15 : vector<128x128xf32>
    %c0_13 = arith.constant 0 : index
    %c0_14 = arith.constant 0 : index
    %17 = vector.load %arg3[%c0_13, %c0_14] : memref<128x128xbf16, #tpu.memory_space<vmem>>, vector<128x128xbf16>
    %18 = arith.extf %17 : vector<128x128xbf16> to vector<128x128xf32>
    %19 = arith.mulf %16, %18 : vector<128x128xf32>
    %cst_15 = arith.constant 0.000000e+00 : f32
    %20 = vector.broadcast %cst_15 : f32 to vector<128x128xf32>
    %21 = arith.maximumf %19, %20 : vector<128x128xf32>
    %22 = arith.truncf %21 : vector<128x128xf32> to vector<128x128xbf16>
    %c0_16 = arith.constant 0 : index
    %c0_17 = arith.constant 0 : index
    %23 = vector.load %arg8[%c0_16, %c0_17] : memref<128x128xbf16, #tpu.memory_space<vmem>>, vector<128x128xbf16>
    %cst_18 = arith.constant dense<0.000000e+00> : vector<128x128xf32>
    %24 = tpu.matmul %22, %23, %cst_18 {dimension_numbers = #tpu.dot_dimension_numbers<[1], [0], [0], [1], [0, 0, 1, 1], [], []>} : vector<128x128xbf16>, vector<128x128xbf16>, vector<128x128xf32> -> vector<128x128xf32>
    %c0_19 = arith.constant 0 : index
    %c0_20 = arith.constant 0 : index
    %25 = vector.load %arg9[%c0_19, %c0_20] : memref<1x128xf32, #tpu.memory_space<vmem>>, vector<1x128xf32>
    %26 = vector.broadcast %25 : vector<1x128xf32> to vector<128x128xf32>
    %27 = arith.addf %24, %26 : vector<128x128xf32>
    %c0_21 = arith.constant 0 : index
    %c0_22 = arith.constant 0 : index
    %28 = vector.load %arg10[%c0_21, %c0_22] : memref<128x128xf32, #tpu.memory_space<vmem>>, vector<128x128xf32>
    tpu.vector_store %arg10[%c0_21, %c0_22], %27 {strides = array<i32>} : memref<128x128xf32, #tpu.memory_space<vmem>>, vector<128x128xf32>,
    return
  }
  func.func @transform_0(%arg0: i32) -> (i32, i32) {
    %c0_i32 = arith.constant 0 : i32
    %c0_i32_0 = arith.constant 0 : i32
    return %arg0, %c0_i32 : i32, i32
  }
  func.func @transform_1(%arg0: i32) -> (i32, i32) {
    %c0_i32 = arith.constant 0 : i32
    %c0_i32_0 = arith.constant 0 : i32
    return %arg0, %c0_i32 : i32, i32
  }
  func.func @transform_2(%arg0: i32) -> (i32, i32) {
    %c0_i32 = arith.constant 0 : i32
    %c0_i32_0 = arith.constant 0 : i32
    return %arg0, %c0_i32 : i32, i32
  }
  func.func @transform_3(%arg0: i32) -> (i32, i32) {
    %c0_i32 = arith.constant 0 : i32
    %c0_i32_0 = arith.constant 0 : i32
    %c0_i32_1 = arith.constant 0 : i32
    return %c0_i32, %c0_i32_0 : i32, i32
  }
  func.func @transform_4(%arg0: i32) -> (i32, i32) {
    %c0_i32 = arith.constant 0 : i32
    %c0_i32_0 = arith.constant 0 : i32
    %c0_i32_1 = arith.constant 0 : i32
    return %c0_i32, %c0_i32_0 : i32, i32
  }
  func.func @transform_5(%arg0: i32) -> (i32, i32) {
    %c0_i32 = arith.constant 0 : i32
    %c0_i32_0 = arith.constant 0 : i32
    %c0_i32_1 = arith.constant 0 : i32
    return %c0_i32, %c0_i32_0 : i32, i32
  }
  func.func @transform_6(%arg0: i32) -> (i32, i32) {
    %c0_i32 = arith.constant 0 : i32
    %c0_i32_0 = arith.constant 0 : i32
    %c0_i32_1 = arith.constant 0 : i32
    return %c0_i32, %c0_i32_0 : i32, i32
  }
  func.func @transform_7(%arg0: i32) -> (i32, i32) {
    %c0_i32 = arith.constant 0 : i32
    %c0_i32_0 = arith.constant 0 : i32
    %c0_i32_1 = arith.constant 0 : i32
    return %c0_i32, %c0_i32_0 : i32, i32
  }
  func.func @transform_8(%arg0: i32) -> (i32, i32) {
    %c0_i32 = arith.constant 0 : i32
    %c0_i32_0 = arith.constant 0 : i32
    %c0_i32_1 = arith.constant 0 : i32
    return %c0_i32, %c0_i32_0 : i32, i32
  }
  func.func @transform_9(%arg0: i32) -> (i32, i32) {
    %c0_i32 = arith.constant 0 : i32
    %c0_i32_0 = arith.constant 0 : i32
    return %arg0, %c0_i32 : i32, i32
  }
}

</mosaic_0001>

<llo_original>
// kernel: fc_forward.3
$region0: #{fc_forward.3}
  #allocation0 [shape = 'u32[]', space=smem, size = 0x4, offset = 0x4, fixed_abs, tag = 'smem constant byte address 0x4 - core index']
  #allocation1 [shape = 'u32[72,128]{1,0:T(1,128)}', space=vmem, size = 0x9000, scoped, tag = 'internal scratch']
  %s0 = inlined_call_operand.vmem [shape: bf16[128,128], index: 0, kind: input, shape index: {}]
  %s1 = inlined_call_operand.vmem [shape: bf16[128,128], index: 1, kind: input, shape index: {}]
  %s2 = inlined_call_operand.vmem [shape: bf16[128,128], index: 2, kind: input, shape index: {}]
  %s3 = inlined_call_operand.vmem [shape: bf16[128,128], index: 3, kind: input, shape index: {}]
  %s4 = inlined_call_operand.vmem [shape: f32[1,128], index: 4, kind: input, shape index: {}]
  %s5 = inlined_call_operand.vmem [shape: bf16[128,128], index: 5, kind: input, shape index: {}]
  %s6 = inlined_call_operand.vmem [shape: f32[1,128], index: 6, kind: input, shape index: {}]
  %s7 = inlined_call_operand.vmem [shape: bf16[128,128], index: 7, kind: input, shape index: {}]
  %s8 = inlined_call_operand.vmem [shape: f32[1,128], index: 8, kind: input, shape index: {}]
  %s9 = inlined_call_operand.vmem [shape: f32[128,128], index: 9, kind: output, shape index: {}]
  %s10 = sld [smem:[#allocation0]]
  $region46: #{fc_forward.3} parent=0
    _
  %s12 = ssub.s32 1, %s10
  %s13 = scalar_select 0, %s12, %s10
  // Predicated region
  $region2: #{fc_forward.3} parent=0 // pred_check
    _
  $region3: #{fc_forward.3} parent=0 // pred_check_branch
    %15 = sbr.rel (0) target = $region5
  $region4: #{fc_forward.3} parent=0 // pred_region
    _
  $region5: #{fc_forward.3} parent=0 // pred_fallthru
    _
  // Predicated region
  $region6: #{fc_forward.3} parent=0 // pred_check
    _
  $region7: #{fc_forward.3} parent=0 // pred_check_branch
    %17 = sbr.rel (0) target = $region9
  $region8: #{fc_forward.3} parent=0 // pred_region
    _
  $region9: #{fc_forward.3} parent=0 // pred_fallthru
    _
  // Predicated region
  $region10: #{fc_forward.3} parent=0 // pred_check
    _
  $region11: #{fc_forward.3} parent=0 // pred_check_branch
    %19 = sbr.rel (0) target = $region13
  $region12: #{fc_forward.3} parent=0 // pred_region
    _
  $region13: #{fc_forward.3} parent=0 // pred_fallthru
    _
  // Predicated region
  $region14: #{fc_forward.3} parent=0 // pred_check
    _
  $region15: #{fc_forward.3} parent=0 // pred_check_branch
    %21 = sbr.rel (0) target = $region17
  $region16: #{fc_forward.3} parent=0 // pred_region
    _
  $region17: #{fc_forward.3} parent=0 // pred_fallthru
    _
  // Predicated region
  $region18: #{fc_forward.3} parent=0 // pred_check
    _
  $region19: #{fc_forward.3} parent=0 // pred_check_branch
    %23 = sbr.rel (0) target = $region21
  $region20: #{fc_forward.3} parent=0 // pred_region
    _
  $region21: #{fc_forward.3} parent=0 // pred_fallthru
    _
  // Predicated region
  $region22: #{fc_forward.3} parent=0 // pred_check
    _
  $region23: #{fc_forward.3} parent=0 // pred_check_branch
    %25 = sbr.rel (0) target = $region25
  $region24: #{fc_forward.3} parent=0 // pred_region
    _
  $region25: #{fc_forward.3} parent=0 // pred_fallthru
    _
  // Predicated region
  $region26: #{fc_forward.3} parent=0 // pred_check
    _
  $region27: #{fc_forward.3} parent=0 // pred_check_branch
    %27 = sbr.rel (0) target = $region29
  $region28: #{fc_forward.3} parent=0 // pred_region
    _
  $region29: #{fc_forward.3} parent=0 // pred_fallthru
    _
  // Predicated region
  $region30: #{fc_forward.3} parent=0 // pred_check
    _
  $region31: #{fc_forward.3} parent=0 // pred_check_branch
    %29 = sbr.rel (0) target = $region33
  $region32: #{fc_forward.3} parent=0 // pred_region
    _
  $region33: #{fc_forward.3} parent=0 // pred_fallthru
    _
  // Predicated region
  $region34: #{fc_forward.3} parent=0 // pred_check
    _
  $region35: #{fc_forward.3} parent=0 // pred_check_branch
    %31 = sbr.rel (0) target = $region37
  $region36: #{fc_forward.3} parent=0 // pred_region
    _
  $region37: #{fc_forward.3} parent=0 // pred_fallthru
    _
  %v32 = vld [vmem:[%s0] sm:$0xf]
  %v33 = vld [vmem:[%s0 + $0x4] sm:$0xf]
  %v34 = vld [vmem:[%s0 + $0x8] sm:$0xf]
  %v35 = vld [vmem:[%s0 + $0xc] sm:$0xf]
  %v36 = vld [vmem:[%s0 + $0x10] sm:$0xf]
  %v37 = vld [vmem:[%s0 + $0x14] sm:$0xf]
  %v38 = vld [vmem:[%s0 + $0x18] sm:$0xf]
  %v39 = vld [vmem:[%s0 + $0x1c] sm:$0xf]
  %v40 = vld [vmem:[%s0 + $0x20] sm:$0xf]
  %v41 = vld [vmem:[%s0 + $0x24] sm:$0xf]
  %v42 = vld [vmem:[%s0 + $0x28] sm:$0xf]
  %v43 = vld [vmem:[%s0 + $0x2c] sm:$0xf]
  %v44 = vld [vmem:[%s0 + $0x30] sm:$0xf]
  %v45 = vld [vmem:[%s0 + $0x34] sm:$0xf]
  %v46 = vld [vmem:[%s0 + $0x38] sm:$0xf]
  %v47 = vld [vmem:[%s0 + $0x3c] sm:$0xf]
  %v48 = vld [vmem:[%s3] sm:$0xf]
  %v49 = vld [vmem:[%s3 + $0x4] sm:$0xf]
  %v50 = vld [vmem:[%s3 + $0x8] sm:$0xf]
  %v51 = vld [vmem:[%s3 + $0xc] sm:$0xf]
  %v52 = vld [vmem:[%s3 + $0x10] sm:$0xf]
  %v53 = vld [vmem:[%s3 + $0x14] sm:$0xf]
  %v54 = vld [vmem:[%s3 + $0x18] sm:$0xf]
  %v55 = vld [vmem:[%s3 + $0x1c] sm:$0xf]
  %v56 = vld [vmem:[%s3 + $0x20] sm:$0xf]
  %v57 = vld [vmem:[%s3 + $0x24] sm:$0xf]
  %v58 = vld [vmem:[%s3 + $0x28] sm:$0xf]
  %v59 = vld [vmem:[%s3 + $0x2c] sm:$0xf]
  %v60 = vld [vmem:[%s3 + $0x30] sm:$0xf]
  %v61 = vld [vmem:[%s3 + $0x34] sm:$0xf]
  %v62 = vld [vmem:[%s3 + $0x38] sm:$0xf]
  %v63 = vld [vmem:[%s3 + $0x3c] sm:$0xf]
  %v64 = vld [vmem:[%s4] sm:$0x1]
  %v66 = vperm.slane %v64, 0
  %v84 = vunpack.c.l.b16 %v32
  %v85 = vunpack.c.l.b16 %v33
  %v86 = vunpack.c.l.b16 %v34
  %v87 = vunpack.c.l.b16 %v35
  %v88 = vunpack.c.l.b16 %v36
  %v89 = vunpack.c.l.b16 %v37
  %v90 = vunpack.c.l.b16 %v38
  %v91 = vunpack.c.l.b16 %v39
  %v92 = vunpack.c.l.b16 %v40
  %v93 = vunpack.c.l.b16 %v41
  %v94 = vunpack.c.l.b16 %v42
  %v95 = vunpack.c.l.b16 %v43
  %v96 = vunpack.c.l.b16 %v44
  %v97 = vunpack.c.l.b16 %v45
  %v98 = vunpack.c.l.b16 %v46
  %v99 = vunpack.c.l.b16 %v47
  %v100 = vpack.c.b16 %v85, %v84
  %v101 = vpack.c.b16 %v87, %v86
  %v102 = vpack.c.b16 %v89, %v88
  %v103 = vpack.c.b16 %v91, %v90
  %v104 = vpack.c.b16 %v93, %v92
  %v105 = vpack.c.b16 %v95, %v94
  %v106 = vpack.c.b16 %v97, %v96
  %v107 = vpack.c.b16 %v99, %v98
  %v132 = vunpack.c.l.b16 %v48
  %v133 = vunpack.c.l.b16 %v49
  %v134 = vunpack.c.l.b16 %v50
  %v135 = vunpack.c.l.b16 %v51
  %v136 = vunpack.c.l.b16 %v52
  %v137 = vunpack.c.l.b16 %v53
  %v138 = vunpack.c.l.b16 %v54
  %v139 = vunpack.c.l.b16 %v55
  %v140 = vunpack.c.l.b16 %v56
  %v141 = vunpack.c.l.b16 %v57
  %v142 = vunpack.c.l.b16 %v58
  %v143 = vunpack.c.l.b16 %v59
  %v144 = vunpack.c.l.b16 %v60
  %v145 = vunpack.c.l.b16 %v61
  %v146 = vunpack.c.l.b16 %v62
  %v147 = vunpack.c.l.b16 %v63
  %v148 = vpack.c.b16 %v133, %v132
  %v149 = vpack.c.b16 %v135, %v134
  %v150 = vpack.c.b16 %v137, %v136
  %v151 = vpack.c.b16 %v139, %v138
  %v152 = vpack.c.b16 %v141, %v140
  %v153 = vpack.c.b16 %v143, %v142
  %v154 = vpack.c.b16 %v145, %v144
  %v155 = vpack.c.b16 %v147, %v146
  %164 = vmatpush.bf16.msra.mxu0 %v155
  %165 = vmatpush.bf16.msra.mxu0 %v154
  %166 = vmatpush.bf16.msra.mxu0 %v153
  %167 = vmatpush.bf16.msra.mxu0 %v152
  %168 = vmatpush.bf16.msra.mxu0 %v151
  %169 = vmatpush.bf16.msra.mxu0 %v150
  %170 = vmatpush.bf16.msra.mxu0 %v149
  %171 = vmatpush.bf16.msra.mxu0 %v148
  %172 = vmatmul.bf16.gmra.mxu0 %v100
  %v173 = vpop.f32.mrf.mxu0
  %v174 = vadd.f32 %v66, %v173
  %v175 = vpop.f32.mrf.mxu0
  %v176 = vadd.f32 %v66, %v175
  %177 = vmatmul.bf16.gmra.mxu0 %v101
  %v178 = vpop.f32.mrf.mxu0
  %v179 = vadd.f32 %v66, %v178
  %v180 = vpop.f32.mrf.mxu0
  %v181 = vadd.f32 %v66, %v180
  %182 = vmatmul.bf16.gmra.mxu0 %v102
  %v183 = vpop.f32.mrf.mxu0
  %v184 = vadd.f32 %v66, %v183
  %v185 = vpop.f32.mrf.mxu0
  %v186 = vadd.f32 %v66, %v185
  %187 = vmatmul.bf16.gmra.mxu0 %v103
  %v188 = vpop.f32.mrf.mxu0
  %v189 = vadd.f32 %v66, %v188
  %v190 = vpop.f32.mrf.mxu0
  %v191 = vadd.f32 %v66, %v190
  %192 = vmatmul.bf16.gmra.mxu0 %v104
  %v193 = vpop.f32.mrf.mxu0
  %v194 = vadd.f32 %v66, %v193
  %v195 = vpop.f32.mrf.mxu0
  %v196 = vadd.f32 %v66, %v195
  %197 = vmatmul.bf16.gmra.mxu0 %v105
  %v198 = vpop.f32.mrf.mxu0
  %v199 = vadd.f32 %v66, %v198
  %v200 = vpop.f32.mrf.mxu0
  %v201 = vadd.f32 %v66, %v200
  %202 = vmatmul.bf16.gmra.mxu0 %v106
  %v203 = vpop.f32.mrf.mxu0
  %v204 = vadd.f32 %v66, %v203
  %v205 = vpop.f32.mrf.mxu0
  %v206 = vadd.f32 %v66, %v205
  %207 = vmatmul.bf16.gmra.mxu0 %v107
  %v208 = vpop.f32.mrf.mxu0
  %v209 = vadd.f32 %v66, %v208
  %v210 = vpop.f32.mrf.mxu0
  %v211 = vadd.f32 %v66, %v210
  %212 = vdwg.mxu0
  %v213 = vld [vmem:[%s1] sm:$0xf]
  %v214 = vld [vmem:[%s1 + $0x4] sm:$0xf]
  %v215 = vld [vmem:[%s1 + $0x8] sm:$0xf]
  %v216 = vld [vmem:[%s1 + $0xc] sm:$0xf]
  %v217 = vld [vmem:[%s1 + $0x10] sm:$0xf]
  %v218 = vld [vmem:[%s1 + $0x14] sm:$0xf]
  %v219 = vld [vmem:[%s1 + $0x18] sm:$0xf]
  %v220 = vld [vmem:[%s1 + $0x1c] sm:$0xf]
  %v221 = vld [vmem:[%s1 + $0x20] sm:$0xf]
  %v222 = vld [vmem:[%s1 + $0x24] sm:$0xf]
  %v223 = vld [vmem:[%s1 + $0x28] sm:$0xf]
  %v224 = vld [vmem:[%s1 + $0x2c] sm:$0xf]
  %v225 = vld [vmem:[%s1 + $0x30] sm:$0xf]
  %v226 = vld [vmem:[%s1 + $0x34] sm:$0xf]
  %v227 = vld [vmem:[%s1 + $0x38] sm:$0xf]
  %v228 = vld [vmem:[%s1 + $0x3c] sm:$0xf]
  %v229 = vunpack.c.l.bf16 %v213
  %v230 = vunpack.c.l.bf16 %v214
  %v231 = vunpack.c.l.bf16 %v215
  %v232 = vunpack.c.l.bf16 %v216
  %v233 = vunpack.c.l.bf16 %v217
  %v234 = vunpack.c.l.bf16 %v218
  %v235 = vunpack.c.l.bf16 %v219
  %v236 = vunpack.c.l.bf16 %v220
  %v237 = vunpack.c.l.bf16 %v221
  %v238 = vunpack.c.l.bf16 %v222
  %v239 = vunpack.c.l.bf16 %v223
  %v240 = vunpack.c.l.bf16 %v224
  %v241 = vunpack.c.l.bf16 %v225
  %v242 = vunpack.c.l.bf16 %v226
  %v243 = vunpack.c.l.bf16 %v227
  %v244 = vunpack.c.l.bf16 %v228
  %v245 = vmul.f32 %v174, %v229
  %v246 = vmul.f32 %v176, %v230
  %v247 = vmul.f32 %v179, %v231
  %v248 = vmul.f32 %v181, %v232
  %v249 = vmul.f32 %v184, %v233
  %v250 = vmul.f32 %v186, %v234
  %v251 = vmul.f32 %v189, %v235
  %v252 = vmul.f32 %v191, %v236
  %v253 = vmul.f32 %v194, %v237
  %v254 = vmul.f32 %v196, %v238
  %v255 = vmul.f32 %v199, %v239
  %v256 = vmul.f32 %v201, %v240
  %v257 = vmul.f32 %v204, %v241
  %v258 = vmul.f32 %v206, %v242
  %v259 = vmul.f32 %v209, %v243
  %v260 = vmul.f32 %v211, %v244
  %v261 = vmax.f32 %v245, 0.0
  %v262 = vmax.f32 %v246, 0.0
  %v263 = vmax.f32 %v247, 0.0
  %v264 = vmax.f32 %v248, 0.0
  %v265 = vmax.f32 %v249, 0.0
  %v266 = vmax.f32 %v250, 0.0
  %v267 = vmax.f32 %v251, 0.0
  %v268 = vmax.f32 %v252, 0.0
  %v269 = vmax.f32 %v253, 0.0
  %v270 = vmax.f32 %v254, 0.0
  %v271 = vmax.f32 %v255, 0.0
  %v272 = vmax.f32 %v256, 0.0
  %v273 = vmax.f32 %v257, 0.0
  %v274 = vmax.f32 %v258, 0.0
  %v275 = vmax.f32 %v259, 0.0
  %v276 = vmax.f32 %v260, 0.0
  %v277 = vpack.c.bf16 %v262, %v261
  %v278 = vpack.c.bf16 %v264, %v263
  %v279 = vpack.c.bf16 %v266, %v265
  %v280 = vpack.c.bf16 %v268, %v267
  %v281 = vpack.c.bf16 %v270, %v269
  %v282 = vpack.c.bf16 %v272, %v271
  %v283 = vpack.c.bf16 %v274, %v273
  %v284 = vpack.c.bf16 %v276, %v275
  %v285 = vld [vmem:[%s5] sm:$0xf]
  %v286 = vld [vmem:[%s5 + $0x4] sm:$0xf]
  %v287 = vld [vmem:[%s5 + $0x8] sm:$0xf]
  %v288 = vld [vmem:[%s5 + $0xc] sm:$0xf]
  %v289 = vld [vmem:[%s5 + $0x10] sm:$0xf]
  %v290 = vld [vmem:[%s5 + $0x14] sm:$0xf]
  %v291 = vld [vmem:[%s5 + $0x18] sm:$0xf]
  %v292 = vld [vmem:[%s5 + $0x1c] sm:$0xf]
  %v293 = vld [vmem:[%s5 + $0x20] sm:$0xf]
  %v294 = vld [vmem:[%s5 + $0x24] sm:$0xf]
  %v295 = vld [vmem:[%s5 + $0x28] sm:$0xf]
  %v296 = vld [vmem:[%s5 + $0x2c] sm:$0xf]
  %v297 = vld [vmem:[%s5 + $0x30] sm:$0xf]
  %v298 = vld [vmem:[%s5 + $0x34] sm:$0xf]
  %v299 = vld [vmem:[%s5 + $0x38] sm:$0xf]
  %v300 = vld [vmem:[%s5 + $0x3c] sm:$0xf]
  %v301 = vld [vmem:[%s6] sm:$0x1]
  %v303 = vperm.slane %v301, 0
  %v321 = vunpack.c.l.b16 %v285
  %v322 = vunpack.c.l.b16 %v286
  %v323 = vunpack.c.l.b16 %v287
  %v324 = vunpack.c.l.b16 %v288
  %v325 = vunpack.c.l.b16 %v289
  %v326 = vunpack.c.l.b16 %v290
  %v327 = vunpack.c.l.b16 %v291
  %v328 = vunpack.c.l.b16 %v292
  %v329 = vunpack.c.l.b16 %v293
  %v330 = vunpack.c.l.b16 %v294
  %v331 = vunpack.c.l.b16 %v295
  %v332 = vunpack.c.l.b16 %v296
  %v333 = vunpack.c.l.b16 %v297
  %v334 = vunpack.c.l.b16 %v298
  %v335 = vunpack.c.l.b16 %v299
  %v336 = vunpack.c.l.b16 %v300
  %v337 = vpack.c.b16 %v322, %v321
  %v338 = vpack.c.b16 %v324, %v323
  %v339 = vpack.c.b16 %v326, %v325
  %v340 = vpack.c.b16 %v328, %v327
  %v341 = vpack.c.b16 %v330, %v329
  %v342 = vpack.c.b16 %v332, %v331
  %v343 = vpack.c.b16 %v334, %v333
  %v344 = vpack.c.b16 %v336, %v335
  %353 = vmatpush.bf16.msra.mxu0 %v344
  %354 = vmatpush.bf16.msra.mxu0 %v343
  %355 = vmatpush.bf16.msra.mxu0 %v342
  %356 = vmatpush.bf16.msra.mxu0 %v341
  %357 = vmatpush.bf16.msra.mxu0 %v340
  %358 = vmatpush.bf16.msra.mxu0 %v339
  %359 = vmatpush.bf16.msra.mxu0 %v338
  %360 = vmatpush.bf16.msra.mxu0 %v337
  %361 = vmatmul.bf16.gmra.mxu0 %v277
  %v362 = vpop.f32.mrf.mxu0
  %v363 = vadd.f32 %v303, %v362
  %v364 = vpop.f32.mrf.mxu0
  %v365 = vadd.f32 %v303, %v364
  %366 = vmatmul.bf16.gmra.mxu0 %v278
  %v367 = vpop.f32.mrf.mxu0
  %v368 = vadd.f32 %v303, %v367
  %v369 = vpop.f32.mrf.mxu0
  %v370 = vadd.f32 %v303, %v369
  %371 = vmatmul.bf16.gmra.mxu0 %v279
  %v372 = vpop.f32.mrf.mxu0
  %v373 = vadd.f32 %v303, %v372
  %v374 = vpop.f32.mrf.mxu0
  %v375 = vadd.f32 %v303, %v374
  %376 = vmatmul.bf16.gmra.mxu0 %v280
  %v377 = vpop.f32.mrf.mxu0
  %v378 = vadd.f32 %v303, %v377
  %v379 = vpop.f32.mrf.mxu0
  %v380 = vadd.f32 %v303, %v379
  %381 = vmatmul.bf16.gmra.mxu0 %v281
  %v382 = vpop.f32.mrf.mxu0
  %v383 = vadd.f32 %v303, %v382
  %v384 = vpop.f32.mrf.mxu0
  %v385 = vadd.f32 %v303, %v384
  %386 = vmatmul.bf16.gmra.mxu0 %v282
  %v387 = vpop.f32.mrf.mxu0
  %v388 = vadd.f32 %v303, %v387
  %v389 = vpop.f32.mrf.mxu0
  %v390 = vadd.f32 %v303, %v389
  %391 = vmatmul.bf16.gmra.mxu0 %v283
  %v392 = vpop.f32.mrf.mxu0
  %v393 = vadd.f32 %v303, %v392
  %v394 = vpop.f32.mrf.mxu0
  %v395 = vadd.f32 %v303, %v394
  %396 = vmatmul.bf16.gmra.mxu0 %v284
  %v397 = vpop.f32.mrf.mxu0
  %v398 = vadd.f32 %v303, %v397
  %v399 = vpop.f32.mrf.mxu0
  %v400 = vadd.f32 %v303, %v399
  %401 = vdwg.mxu0
  %v402 = vld [vmem:[%s2] sm:$0xf]
  %v403 = vld [vmem:[%s2 + $0x4] sm:$0xf]
  %v404 = vld [vmem:[%s2 + $0x8] sm:$0xf]
  %v405 = vld [vmem:[%s2 + $0xc] sm:$0xf]
  %v406 = vld [vmem:[%s2 + $0x10] sm:$0xf]
  %v407 = vld [vmem:[%s2 + $0x14] sm:$0xf]
  %v408 = vld [vmem:[%s2 + $0x18] sm:$0xf]
  %v409 = vld [vmem:[%s2 + $0x1c] sm:$0xf]
  %v410 = vld [vmem:[%s2 + $0x20] sm:$0xf]
  %v411 = vld [vmem:[%s2 + $0x24] sm:$0xf]
  %v412 = vld [vmem:[%s2 + $0x28] sm:$0xf]
  %v413 = vld [vmem:[%s2 + $0x2c] sm:$0xf]
  %v414 = vld [vmem:[%s2 + $0x30] sm:$0xf]
  %v415 = vld [vmem:[%s2 + $0x34] sm:$0xf]
  %v416 = vld [vmem:[%s2 + $0x38] sm:$0xf]
  %v417 = vld [vmem:[%s2 + $0x3c] sm:$0xf]
  %v418 = vunpack.c.l.bf16 %v402
  %v419 = vunpack.c.l.bf16 %v403
  %v420 = vunpack.c.l.bf16 %v404
  %v421 = vunpack.c.l.bf16 %v405
  %v422 = vunpack.c.l.bf16 %v406
  %v423 = vunpack.c.l.bf16 %v407
  %v424 = vunpack.c.l.bf16 %v408
  %v425 = vunpack.c.l.bf16 %v409
  %v426 = vunpack.c.l.bf16 %v410
  %v427 = vunpack.c.l.bf16 %v411
  %v428 = vunpack.c.l.bf16 %v412
  %v429 = vunpack.c.l.bf16 %v413
  %v430 = vunpack.c.l.bf16 %v414
  %v431 = vunpack.c.l.bf16 %v415
  %v432 = vunpack.c.l.bf16 %v416
  %v433 = vunpack.c.l.bf16 %v417
  %v434 = vmul.f32 %v363, %v418
  %v435 = vmul.f32 %v365, %v419
  %v436 = vmul.f32 %v368, %v420
  %v437 = vmul.f32 %v370, %v421
  %v438 = vmul.f32 %v373, %v422
  %v439 = vmul.f32 %v375, %v423
  %v440 = vmul.f32 %v378, %v424
  %v441 = vmul.f32 %v380, %v425
  %v442 = vmul.f32 %v383, %v426
  %v443 = vmul.f32 %v385, %v427
  %v444 = vmul.f32 %v388, %v428
  %v445 = vmul.f32 %v390, %v429
  %v446 = vmul.f32 %v393, %v430
  %v447 = vmul.f32 %v395, %v431
  %v448 = vmul.f32 %v398, %v432
  %v449 = vmul.f32 %v400, %v433
  %v450 = vmax.f32 %v434, 0.0
  %v451 = vmax.f32 %v435, 0.0
  %v452 = vmax.f32 %v436, 0.0
  %v453 = vmax.f32 %v437, 0.0
  %v454 = vmax.f32 %v438, 0.0
  %v455 = vmax.f32 %v439, 0.0
  %v456 = vmax.f32 %v440, 0.0
  %v457 = vmax.f32 %v441, 0.0
  %v458 = vmax.f32 %v442, 0.0
  %v459 = vmax.f32 %v443, 0.0
  %v460 = vmax.f32 %v444, 0.0
  %v461 = vmax.f32 %v445, 0.0
  %v462 = vmax.f32 %v446, 0.0
  %v463 = vmax.f32 %v447, 0.0
  %v464 = vmax.f32 %v448, 0.0
  %v465 = vmax.f32 %v449, 0.0
  %v466 = vpack.c.bf16 %v451, %v450
  %v467 = vpack.c.bf16 %v453, %v452
  %v468 = vpack.c.bf16 %v455, %v454
  %v469 = vpack.c.bf16 %v457, %v456
  %v470 = vpack.c.bf16 %v459, %v458
  %v471 = vpack.c.bf16 %v461, %v460
  %v472 = vpack.c.bf16 %v463, %v462
  %v473 = vpack.c.bf16 %v465, %v464
  %v474 = vld [vmem:[%s7] sm:$0xf]
  %v475 = vld [vmem:[%s7 + $0x4] sm:$0xf]
  %v476 = vld [vmem:[%s7 + $0x8] sm:$0xf]
  %v477 = vld [vmem:[%s7 + $0xc] sm:$0xf]
  %v478 = vld [vmem:[%s7 + $0x10] sm:$0xf]
  %v479 = vld [vmem:[%s7 + $0x14] sm:$0xf]
  %v480 = vld [vmem:[%s7 + $0x18] sm:$0xf]
  %v481 = vld [vmem:[%s7 + $0x1c] sm:$0xf]
  %v482 = vld [vmem:[%s7 + $0x20] sm:$0xf]
  %v483 = vld [vmem:[%s7 + $0x24] sm:$0xf]
  %v484 = vld [vmem:[%s7 + $0x28] sm:$0xf]
  %v485 = vld [vmem:[%s7 + $0x2c] sm:$0xf]
  %v486 = vld [vmem:[%s7 + $0x30] sm:$0xf]
  %v487 = vld [vmem:[%s7 + $0x34] sm:$0xf]
  %v488 = vld [vmem:[%s7 + $0x38] sm:$0xf]
  %v489 = vld [vmem:[%s7 + $0x3c] sm:$0xf]
  %v490 = vld [vmem:[%s8] sm:$0x1]
  %v492 = vperm.slane %v490, 0
  %v510 = vunpack.c.l.b16 %v474
  %v511 = vunpack.c.l.b16 %v475
  %v512 = vunpack.c.l.b16 %v476
  %v513 = vunpack.c.l.b16 %v477
  %v514 = vunpack.c.l.b16 %v478
  %v515 = vunpack.c.l.b16 %v479
  %v516 = vunpack.c.l.b16 %v480
  %v517 = vunpack.c.l.b16 %v481
  %v518 = vunpack.c.l.b16 %v482
  %v519 = vunpack.c.l.b16 %v483
  %v520 = vunpack.c.l.b16 %v484
  %v521 = vunpack.c.l.b16 %v485
  %v522 = vunpack.c.l.b16 %v486
  %v523 = vunpack.c.l.b16 %v487
  %v524 = vunpack.c.l.b16 %v488
  %v525 = vunpack.c.l.b16 %v489
  %v526 = vpack.c.b16 %v511, %v510
  %v527 = vpack.c.b16 %v513, %v512
  %v528 = vpack.c.b16 %v515, %v514
  %v529 = vpack.c.b16 %v517, %v516
  %v530 = vpack.c.b16 %v519, %v518
  %v531 = vpack.c.b16 %v521, %v520
  %v532 = vpack.c.b16 %v523, %v522
  %v533 = vpack.c.b16 %v525, %v524
  %542 = vmatpush.bf16.msra.mxu0 %v533
  %543 = vmatpush.bf16.msra.mxu0 %v532
  %544 = vmatpush.bf16.msra.mxu0 %v531
  %545 = vmatpush.bf16.msra.mxu0 %v530
  %546 = vmatpush.bf16.msra.mxu0 %v529
  %547 = vmatpush.bf16.msra.mxu0 %v528
  %548 = vmatpush.bf16.msra.mxu0 %v527
  %549 = vmatpush.bf16.msra.mxu0 %v526
  %550 = vmatmul.bf16.gmra.mxu0 %v466
  %v551 = vpop.f32.mrf.mxu0
  %v552 = vadd.f32 %v492, %v551
  %v553 = vpop.f32.mrf.mxu0
  %v554 = vadd.f32 %v492, %v553
  %555 = vmatmul.bf16.gmra.mxu0 %v467
  %v556 = vpop.f32.mrf.mxu0
  %v557 = vadd.f32 %v492, %v556
  %v558 = vpop.f32.mrf.mxu0
  %v559 = vadd.f32 %v492, %v558
  %560 = vmatmul.bf16.gmra.mxu0 %v468
  %v561 = vpop.f32.mrf.mxu0
  %v562 = vadd.f32 %v492, %v561
  %v563 = vpop.f32.mrf.mxu0
  %v564 = vadd.f32 %v492, %v563
  %565 = vmatmul.bf16.gmra.mxu0 %v469
  %v566 = vpop.f32.mrf.mxu0
  %v567 = vadd.f32 %v492, %v566
  %v568 = vpop.f32.mrf.mxu0
  %v569 = vadd.f32 %v492, %v568
  %570 = vmatmul.bf16.gmra.mxu0 %v470
  %v571 = vpop.f32.mrf.mxu0
  %v572 = vadd.f32 %v492, %v571
  %v573 = vpop.f32.mrf.mxu0
  %v574 = vadd.f32 %v492, %v573
  %575 = vmatmul.bf16.gmra.mxu0 %v471
  %v576 = vpop.f32.mrf.mxu0
  %v577 = vadd.f32 %v492, %v576
  %v578 = vpop.f32.mrf.mxu0
  %v579 = vadd.f32 %v492, %v578
  %580 = vmatmul.bf16.gmra.mxu0 %v472
  %v581 = vpop.f32.mrf.mxu0
  %v582 = vadd.f32 %v492, %v581
  %v583 = vpop.f32.mrf.mxu0
  %v584 = vadd.f32 %v492, %v583
  %585 = vmatmul.bf16.gmra.mxu0 %v473
  %v586 = vpop.f32.mrf.mxu0
  %v587 = vadd.f32 %v492, %v586
  %v588 = vpop.f32.mrf.mxu0
  %v589 = vadd.f32 %v492, %v588
  %590 = vdwg.mxu0
  %591 = vst [vmem:[%s9] sm:$0xff] %v552
  %592 = vst [vmem:[%s9 + $0x8] sm:$0xff] %v554
  %593 = vst [vmem:[%s9 + $0x10] sm:$0xff] %v557
  %594 = vst [vmem:[%s9 + $0x18] sm:$0xff] %v559
  %595 = vst [vmem:[%s9 + $0x20] sm:$0xff] %v562
  %596 = vst [vmem:[%s9 + $0x28] sm:$0xff] %v564
  %597 = vst [vmem:[%s9 + $0x30] sm:$0xff] %v567
  %598 = vst [vmem:[%s9 + $0x38] sm:$0xff] %v569
  %599 = vst [vmem:[%s9 + $0x40] sm:$0xff] %v572
  %600 = vst [vmem:[%s9 + $0x48] sm:$0xff] %v574
  %601 = vst [vmem:[%s9 + $0x50] sm:$0xff] %v577
  %602 = vst [vmem:[%s9 + $0x58] sm:$0xff] %v579
  %603 = vst [vmem:[%s9 + $0x60] sm:$0xff] %v582
  %604 = vst [vmem:[%s9 + $0x68] sm:$0xff] %v584
  %605 = vst [vmem:[%s9 + $0x70] sm:$0xff] %v587
  %606 = vst [vmem:[%s9 + $0x78] sm:$0xff] %v589
  // Predicated region
  $region38: #{fc_forward.3} parent=0 // pred_check
    _
  $region39: #{fc_forward.3} parent=0 // pred_check_branch
    %608 = sbr.rel (0) target = $region41
  $region40: #{fc_forward.3} parent=0 // pred_region
    _
  $region41: #{fc_forward.3} parent=0 // pred_fallthru
    _
  // Predicated region
  $region42: #{fc_forward.3} parent=0 // pred_check
    _
  $region43: #{fc_forward.3} parent=0 // pred_check_branch
    %610 = sbr.rel (0) target = $region45
  $region44: #{fc_forward.3} parent=0 // pred_region
    _
  $region45: #{fc_forward.3} parent=0 // pred_fallthru
    _

</llo_original>
